<compile_context>
chip_gen: v7x
topology: tpu7x:2x2x1
jax: 0.10.0
libtpu: 0.0.40
codegen_flags: <defaults>
</compile_context>

<pallas_src>
import functools
import math

import jax
import jax.numpy as jnp
from jax.experimental import pallas as pl
from jax.experimental.pallas import tpu as pltpu


_MIB = 1024 * 1024
# ~4 MiB input blocks: within the recommended range for v5e (2-4), v6e (~4)
# and v7x (4-8), and far under the tightest VMEM budget even triple-buffered.
_TARGET_BLOCK_BYTES = 4 * _MIB
# When `inner` must be tiled, keep lane tiles at a DMA-friendly size.
_INNER_TILE_LANES = 2048


def _vmem_capacity_bytes():
    try:
        cap = int(getattr(pltpu.get_tpu_info(), "vmem_capacity_bytes"))
        if cap > 0:
            return cap
    except Exception:
        pass
    return 64 * _MIB  # conservative: v7x


def _round_down(x, m):
    return max(m, (x // m) * m)


def _round_up(x, m):
    return ((x + m - 1) // m) * m


def _sublane_unit(dtype):
    # Sub-32-bit dtypes pack along sublanes: 8 rows f32, 16 bf16, 32 int8/fp8.
    return max(8, 32 // jnp.dtype(dtype).itemsize)


# ----------------------------------------------------------------------------
# Kernel: accumulate partial sums over the reduce axis, finalize on last step.
#   3-D path: x block (TO, TR, TI) -> acc/out block (TO, TI)  (keepdims=False)
#   2-D path: x block (TO, TR)     -> acc/out block (TO, 1)   (keepdims=True)
# The reduce axis is always axis 1 of the input block.
# ----------------------------------------------------------------------------
def _mean_kernel(x_ref, o_ref, *scratch, inv_r, keepdims, reduce_sz, tr,
                 needs_mask, reduce_grid_axis):
    # f32 outputs accumulate directly into the resident output block.
    acc_ref = scratch[0] if scratch else o_ref
    k = pl.program_id(reduce_grid_axis)

    @pl.when(k == 0)
    def _init():
        acc_ref[...] = jnp.zeros_like(acc_ref)

    x = x_ref[...]
    if needs_mask:
        # Pallas pads partial *input* blocks with unspecified data: zero the
        # overhang of the (possibly partial) reduce block before summing.
        remaining = reduce_sz - k * tr
        idx = jax.lax.broadcasted_iota(jnp.int32, x.shape, 1)
        x = jnp.where(idx < remaining, x, jnp.zeros((), x.dtype))

    # Fuse the upcast into the reduction: no full-size f32 temporary.
    acc_ref[...] += jnp.sum(x, axis=1, keepdims=keepdims, dtype=jnp.float32)

    @pl.when(k == pl.num_programs(reduce_grid_axis) - 1)
    def _finalize():
        o_ref[...] = (acc_ref[...] * inv_r).astype(o_ref.dtype)


# ----------------------------------------------------------------------------
# Wrapper: torch.Tensor.mean(dim, keep_dim) over a single axis.
# ----------------------------------------------------------------------------
def mean_pallas(x, dim, keep_dim=False, *, _target_block_bytes=None):
    target = _TARGET_BLOCK_BYTES if _target_block_bytes is None else int(_target_block_bytes)

    ndim = x.ndim
    if dim < 0:
        dim += ndim
    assert 0 <= dim < ndim

    shape = x.shape
    outer = math.prod(shape[:dim])
    reduce_sz = shape[dim]
    inner = math.prod(shape[dim + 1:])

    dtype = x.dtype
    itemsize = jnp.dtype(dtype).itemsize
    unit = _sublane_unit(dtype)
    inv_r = 1.0 / float(reduce_sz)
    acc_in_out = jnp.dtype(dtype) == jnp.dtype(jnp.float32)

    if inner == 1:
        # ---------------- last-axis reduction: 2-D (outer, reduce) view ------
        x_in = x.reshape(outer, reduce_sz)
        # Reduce tile on the lane axis: multiple of 128 (or the full axis).
        # Budget accounts for the minimal `unit`-row outer tile.
        tr_cap = max(128, target // (unit * itemsize))
        tr = reduce_sz if reduce_sz <= tr_cap else _round_down(tr_cap, 128)
        needs_mask = (tr < reduce_sz) and (reduce_sz % tr != 0)

        to_cap = max(1, target // (tr * itemsize))
        to = outer if outer <= to_cap else min(outer, _round_down(to_cap, unit))
        # v7x has two TensorCores: ensure >=2 tiles on the parallel axis.
        if pl.cdiv(outer, to) == 1 and outer >= 2 * unit:
            to = _round_up(pl.cdiv(outer, 2), unit)

        grid = (pl.cdiv(outer, to), pl.cdiv(reduce_sz, tr))
        in_block = (to, tr)
        out_block = (to, 1)
        out_shape2 = (outer, 1)
        keepdims = True
        reduce_grid_axis = 1
        in_index_map = lambda i, k: (i, k)
        out_index_map = lambda i, k: (i, 0)
        semantics = ("parallel", "arbitrary")
    else:
        # ---------------- middle-axis reduction: 3-D (outer, reduce, inner) --
        x_in = x.reshape(outer, reduce_sz, inner)

        # Tile `inner` (lane axis) only if a minimal (unit, unit, inner) block
        # would exceed the target; partial inner/outer blocks need no masking
        # because their garbage only feeds discarded output lanes/rows.
        if unit * unit * inner * itemsize <= target:
            ti = inner
        else:
            ti_cap = _round_down(max(128, target // (unit * unit * itemsize)), 128)
            ti = min(ti_cap, _INNER_TILE_LANES)
        row_bytes = ti * itemsize

        # Reduce tile (sublane axis of the block): multiple of the dtype's
        # sublane unit, budgeted against the minimal `unit`-row outer tile.
        tr_cap = max(unit, target // (unit * row_bytes))
        tr = reduce_sz if reduce_sz <= tr_cap else _round_down(tr_cap, unit)
        needs_mask = (tr < reduce_sz) and (reduce_sz % tr != 0)

        to_cap = max(1, target // (tr * row_bytes))
        to = outer if outer <= to_cap else min(outer, _round_down(to_cap, unit))
        if (pl.cdiv(outer, to) * pl.cdiv(inner, ti)) == 1 and outer >= 2 * unit:
            to = _round_up(pl.cdiv(outer, 2), unit)

        grid = (pl.cdiv(outer, to), pl.cdiv(inner, ti), pl.cdiv(reduce_sz, tr))
        in_block = (to, tr, ti)
        out_block = (to, ti)
        out_shape2 = (outer, inner)
        keepdims = False
        reduce_grid_axis = 2
        in_index_map = lambda i, j, k: (i, k, j)
        out_index_map = lambda i, j, k: (i, j)
        semantics = ("parallel", "parallel", "arbitrary")

    # Scratch only for non-f32 outputs (f32 accumulates in the output block).
    scratch_shapes = []
    acc_bytes = 0
    if not acc_in_out:
        scratch_shapes = [pltpu.VMEM(out_block, jnp.float32)]
        acc_bytes = math.prod(out_block) * 4

    # VMEM budget: triple-buffered input + double-buffered output + acc,
    # plus compiler headroom, capped below physical VMEM (v7x: 64 MiB).
    in_block_bytes = math.prod(in_block) * itemsize
    out_block_bytes = math.prod(out_block) * itemsize
    capacity = _vmem_capacity_bytes()
    need = 3 * in_block_bytes + 2 * out_block_bytes + acc_bytes
    vmem_cap = max(32 * _MIB, capacity - 16 * _MIB)
    vmem_limit = int(min(max(need + 16 * _MIB, 32 * _MIB), vmem_cap))

    cost = pl.CostEstimate(
        flops=outer * reduce_sz * inner,
        transcendentals=0,
        bytes_accessed=(outer * reduce_sz * inner + outer * inner) * itemsize,
    )

    kernel = functools.partial(
        _mean_kernel, inv_r=inv_r, keepdims=keepdims, reduce_sz=reduce_sz,
        tr=tr, needs_mask=needs_mask, reduce_grid_axis=reduce_grid_axis)

    def _call(use_buffered):
        # k-loop compute is tiny vs DMA time -> a 3rd input buffer hides DMA
        # issue latency / pipeline bubbles for one extra block of VMEM.
        spec_kwargs = {"pipeline_mode": pl.Buffered(3)} if use_buffered else {}
        return pl.pallas_call(
            kernel,
            out_shape=jax.ShapeDtypeStruct(out_shape2, dtype),
            grid_spec=pltpu.PrefetchScalarGridSpec(
                num_scalar_prefetch=0,
                grid=grid,
                in_specs=[pl.BlockSpec(in_block, in_index_map, **spec_kwargs)],
                out_specs=pl.BlockSpec(out_block, out_index_map),
                scratch_shapes=scratch_shapes,
            ),
            compiler_params=pltpu.CompilerParams(
                dimension_semantics=semantics,
                vmem_limit_bytes=vmem_limit,
            ),
            cost_estimate=cost,
        )(x_in)

    try:
        out2 = _call(True)
    except Exception:
        out2 = _call(False)

    if keep_dim:
        new_shape = shape[:dim] + (1,) + shape[dim + 1:]
    else:
        new_shape = shape[:dim] + shape[dim + 1:]
    return out2.reshape(new_shape)


if __name__ == "__main__":
    key = jax.random.PRNGKey(0)
    # Small NCHW input, mirroring Mean(dim=1, keep_dim=False).
    x = jax.random.normal(key, (2, 4, 16, 16), dtype=jnp.float32)

    # Middle-axis reduction (channel mean).
    out = jax.block_until_ready(mean_pallas(x, dim=1, keep_dim=False))
    ref = jnp.mean(x, axis=1)
    assert out.shape == ref.shape, (out.shape, ref.shape)
    assert jnp.allclose(out, ref, atol=1e-5, rtol=1e-5)

    # keep_dim=True path.
    out_kd = jax.block_until_ready(mean_pallas(x, dim=1, keep_dim=True))
    assert out_kd.shape == (2, 1, 16, 16)
    assert jnp.allclose(out_kd[:, 0], ref, atol=1e-5, rtol=1e-5)

    # Last-axis reduction exercises the dedicated 2-D (lane-axis) path.
    out_last = jax.block_until_ready(mean_pallas(x, dim=-1, keep_dim=False))
    ref_last = jnp.mean(x, axis=-1)
    assert out_last.shape == ref_last.shape
    assert jnp.allclose(out_last, ref_last, atol=1e-5, rtol=1e-5)

    # bf16 input exercises the f32-scratch accumulation path.
    xb = jax.random.normal(jax.random.PRNGKey(0), (2, 36, 8, 16), dtype=jnp.bfloat16)
    out_b = jax.block_until_ready(mean_pallas(xb, dim=1, keep_dim=False))
    ref_b = jnp.mean(xb.astype(jnp.float32), axis=1).astype(jnp.bfloat16)
    assert out_b.shape == ref_b.shape
    assert jnp.allclose(out_b.astype(jnp.float32), ref_b.astype(jnp.float32),
                        atol=2e-2, rtol=2e-2)

    # Tail-masking paths (non-dividing reduce tiles) forced via a tiny block
    # target: 3-D path ...
    xm = jax.random.normal(jax.random.PRNGKey(0), (4, 36, 8, 16), dtype=jnp.float32)
    out_m = jax.block_until_ready(
        mean_pallas(xm, dim=1, keep_dim=False, _target_block_bytes=8192))
    ref_m = jnp.mean(xm, axis=1)
    assert jnp.allclose(out_m, ref_m, atol=1e-5, rtol=1e-5)
    # ... and 2-D (lane-axis) path.
    x2 = jax.random.normal(jax.random.PRNGKey(0), (8, 300), dtype=jnp.float32)
    out_2 = jax.block_until_ready(
        mean_pallas(x2, dim=-1, keep_dim=False, _target_block_bytes=4096))
    ref_2 = jnp.mean(x2, axis=-1)
    assert jnp.allclose(out_2, ref_2, atol=1e-5, rtol=1e-5)

    print("KERNEL_OK")
</pallas_src>

<mosaic_0001>
module attributes {stable_mosaic.version = 11 : i64} {
  func.func @_mean_kernel(%arg0: i32, %arg1: i32, %arg2: i32, %arg3: memref<2x4x256xf32, #tpu.memory_space<vmem>>, %arg4: memref<2x256xf32, #tpu.memory_space<vmem>>) attributes {dimension_semantics = [#tpu.dimension_semantics<parallel>, #tpu.dimension_semantics<parallel>, #tpu.dimension_semantics<arbitrary>], iteration_bounds = array<i64: 1, 1, 1>, scalar_prefetch = 0 : i64, scratch_operands = 0 : i64, tpu.core_type = #tpu.core_type<tc>, window_params = [{transform_indices = @transform_0, window_bounds = array<i64: 2, 4, 256>}, {transform_indices = @transform_1, window_bounds = array<i64: 2, 256>}]} {
    %c0_i32 = arith.constant 0 : i32
    %0 = arith.cmpi eq, %arg2, %c0_i32 : i32
    %1 = arith.extui %0 : i1 to i32
    %c0_i32_0 = arith.constant 0 : i32
    %2 = arith.cmpi ne, %1, %c0_i32_0 : i32
    scf.if %2 {
      %cst_9 = arith.constant 0.000000e+00 : f32
      %11 = vector.broadcast %cst_9 : f32 to vector<2x256xf32>
      %c0_10 = arith.constant 0 : index
      %c0_11 = arith.constant 0 : index
      %12 = vector.load %arg4[%c0_10, %c0_11] : memref<2x256xf32, #tpu.memory_space<vmem>>, vector<2x256xf32>
      tpu.vector_store %arg4[%c0_10, %c0_11], %11 {strides = array<i32>} : memref<2x256xf32, #tpu.memory_space<vmem>>, vector<2x256xf32>,
    } else {
    }
    %c0 = arith.constant 0 : index
    %c0_1 = arith.constant 0 : index
    %c0_2 = arith.constant 0 : index
    %3 = vector.load %arg3[%c0, %c0_1, %c0_2] : memref<2x4x256xf32, #tpu.memory_space<vmem>>, vector<2x4x256xf32>
    %c0_3 = arith.constant 0 : index
    %c0_4 = arith.constant 0 : index
    %4 = vector.load %arg4[%c0_3, %c0_4] : memref<2x256xf32, #tpu.memory_space<vmem>>, vector<2x256xf32>
    %cst = arith.constant dense<0.000000e+00> : vector<2x256xf32>
    %5 = vector.multi_reduction <add>, %3, %cst [1] : vector<2x4x256xf32> to vector<2x256xf32>
    %6 = arith.addf %4, %5 : vector<2x256xf32>
    %c0_5 = arith.constant 0 : index
    %c0_6 = arith.constant 0 : index
    %7 = vector.load %arg4[%c0_5, %c0_6] : memref<2x256xf32, #tpu.memory_space<vmem>>, vector<2x256xf32>
    tpu.vector_store %arg4[%c0_5, %c0_6], %6 {strides = array<i32>} : memref<2x256xf32, #tpu.memory_space<vmem>>, vector<2x256xf32>,
    %c0_i32_7 = arith.constant 0 : i32
    %8 = arith.cmpi eq, %arg2, %c0_i32_7 : i32
    %9 = arith.extui %8 : i1 to i32
    %c0_i32_8 = arith.constant 0 : i32
    %10 = arith.cmpi ne, %9, %c0_i32_8 : i32
    scf.if %10 {
      %c0_9 = arith.constant 0 : index
      %c0_10 = arith.constant 0 : index
      %11 = vector.load %arg4[%c0_9, %c0_10] : memref<2x256xf32, #tpu.memory_space<vmem>>, vector<2x256xf32>
      %cst_11 = arith.constant 2.500000e-01 : f32
      %12 = vector.broadcast %cst_11 : f32 to vector<2x256xf32>
      %13 = arith.mulf %11, %12 : vector<2x256xf32>
      %c0_12 = arith.constant 0 : index
      %c0_13 = arith.constant 0 : index
      %14 = vector.load %arg4[%c0_12, %c0_13] : memref<2x256xf32, #tpu.memory_space<vmem>>, vector<2x256xf32>
      tpu.vector_store %arg4[%c0_12, %c0_13], %13 {strides = array<i32>} : memref<2x256xf32, #tpu.memory_space<vmem>>, vector<2x256xf32>,
    } else {
    }
    return
  }
  func.func @transform_0(%arg0: i32, %arg1: i32, %arg2: i32) -> (i32, i32, i32) {
    %c0_i32 = arith.constant 0 : i32
    return %arg0, %arg2, %arg1 : i32, i32, i32
  }
  func.func @transform_1(%arg0: i32, %arg1: i32, %arg2: i32) -> (i32, i32) {
    %c0_i32 = arith.constant 0 : i32
    return %arg0, %arg1 : i32, i32
  }
}

</mosaic_0001>

<llo_original>
// kernel: tpu_custom_call.1
$region0: #{tpu_custom_call.1}
  #allocation0 [shape = 'u32[]', space=smem, size = 0x4, offset = 0x4, fixed_abs, tag = 'smem constant byte address 0x4 - core index']
  #allocation1 [shape = 'u32[144,128]{1,0:T(1,128)}', space=vmem, size = 0x12000, scoped, tag = 'internal scratch']
  %s0 = inlined_call_operand.hbm [shape: f32[2,4,256], index: 0, kind: input, shape index: {}]
  %s1 = inlined_call_operand.hbm [shape: f32[2,256], index: 1, kind: output, shape index: {}]
  %s2 = sld [smem:[#allocation0]]
  $region26: #{tpu_custom_call.1} parent=0
    _
  %s4 = ssub.s32 1, %s2
  %s5 = scalar_select 0, %s4, %s2
  $region1: #{tpu_custom_call.1} parent=0
    #allocation2 [shape = 'u8[8192]{0}', space=vmem, size = 0x2000, scoped, tag = 'input window, operand 0, single buffered']
    #allocation3 [shape = 's32[1]{0}', space=sflag, size = 0x4, scoped, tag = 'scoped memory for tpu_custom_call.1']
    #allocation4 [shape = 's32[1]{0}', space=sflag, size = 0x4, scoped, tag = 'scoped memory for tpu_custom_call.1']
    #allocation5 [shape = 'u8[2048]{0}', space=vmem, size = 0x800, scoped, tag = 'output window, operand 0, single buffered']
    %6 = vsyncpa [#allocation3], 0
    %7 = vsyncpa [#allocation4], 0
    // Predicated region
    $region2: #{tpu_custom_call.1} parent=1 // pred_check
      _
    $region3: #{tpu_custom_call.1} parent=1 // pred_check_branch
      %9 = sbr.rel (0) target = $region5
    $region4: #{tpu_custom_call.1} parent=1 // pred_region
      %s11 = ssub.s32 256, 256
      %12 = vsyncadd [#allocation3], %s11
      %s13 = sshll.u32 [#allocation2], 4
      %s14 = int_to_ptr.vmem [resolvable:$true] %s13
      %19 = dma.hbm_to_vmem [thread:$0]  %s0, 256, %s14, [#allocation3], 128, 128, 8
    $region5: #{tpu_custom_call.1} parent=1 // pred_fallthru
      _
    // Predicated region
    $region6: #{tpu_custom_call.1} parent=1 // pred_check
      _
    $region7: #{tpu_custom_call.1} parent=1 // pred_check_branch
      %21 = sbr.rel (0) target = $region9
    $region8: #{tpu_custom_call.1} parent=1 // pred_region
      %22 = dma.done [#allocation3], 256
    $region9: #{tpu_custom_call.1} parent=1 // pred_fallthru
      _
    %p23 = scmp.eq.s32.totalorder 0, 0
    // Predicated region
    $region10: #{tpu_custom_call.1} parent=1 // pred_check
      %p24 = pneg %p23
    $region11: #{tpu_custom_call.1} parent=1 // pred_check_branch
      %26 = sbr.rel (%p24) target = $region13
    $region12: #{tpu_custom_call.1} parent=1 // pred_region
      %27 = vst [vmem:[#allocation5] sm:$0xf] 0.0
    $region13: #{tpu_custom_call.1} parent=1 // pred_fallthru
      _
    %v28 = vld [vmem:[#allocation2] sm:$0xff]
    %v29 = vld [vmem:[#allocation2 + $0x8] sm:$0xff]
    %v30 = vld [vmem:[#allocation5] sm:$0xf]
    %v33 = vcombine.high %v28, %v28
    %v34 = vcombine.high %v29, %v29
    %vm37 = vcmask 1043456
    %v38 = vsel %vm37, %v28, 0.0
    %v39 = vrot.slane %v38, 4
    %v40 = vadd.f32 %v38, %v39
    %v41 = vrot.slane %v40, 2
    %v42 = vadd.f32 %v40, %v41
    %v43 = vrot.slane %v42, 1
    %v44 = vadd.f32 %v42, %v43
    %v45 = vsel %vm37, %v33, 0.0
    %v46 = vrot.slane %v45, 4
    %v47 = vadd.f32 %v45, %v46
    %v48 = vrot.slane %v47, 2
    %v49 = vadd.f32 %v47, %v48
    %v50 = vrot.slane %v49, 1
    %v51 = vadd.f32 %v49, %v50
    %v52 = vsel %vm37, %v29, 0.0
    %v53 = vrot.slane %v52, 4
    %v54 = vadd.f32 %v52, %v53
    %v55 = vrot.slane %v54, 2
    %v56 = vadd.f32 %v54, %v55
    %v57 = vrot.slane %v56, 1
    %v58 = vadd.f32 %v56, %v57
    %v59 = vsel %vm37, %v34, 0.0
    %v60 = vrot.slane %v59, 4
    %v61 = vadd.f32 %v59, %v60
    %v62 = vrot.slane %v61, 2
    %v63 = vadd.f32 %v61, %v62
    %v64 = vrot.slane %v63, 1
    %v65 = vadd.f32 %v63, %v64
    %v70 = vcombine.low %v44, %v51
    %v72 = vunpack.c.l.s4 1983009808
    %v73 = vunpack.c.0.s8 %v72
    %v74 = vlaneseq
    %v75 = vshrl.u32 %v74, 7
    %v76 = vsub.s32 %v73, %v75
    %v77 = vrot.slane %v70, %v76
    %v78 = vcombine.low %v58, %v65
    %v80 = vunpack.c.l.s4 1983009808
    %v81 = vunpack.c.0.s8 %v80
    %v82 = vlaneseq
    %v83 = vshrl.u32 %v82, 7
    %v84 = vsub.s32 %v81, %v83
    %v85 = vrot.slane %v78, %v84
    %vm86 = vcmask 1044484
    %v87 = vsel %vm86, %v77, %v77
    %vm88 = vcmask 1046534
    %v89 = vsel %vm88, %v77, %v87
    %v90 = vrot.slane %v85, 7
    %vm91 = vcmask 1041409
    %v92 = vsel %vm91, %v90, %v89
    %vm93 = vcmask 1043459
    %v94 = vsel %vm93, %v90, %v92
    %vm95 = vcmask 1045509
    %v96 = vsel %vm95, %v90, %v94
    %vm97 = vcmask 1047559
    %v98 = vsel %vm97, %v90, %v96
    %v100 = vadd.f32 %v30, %v98
    %101 = vst [vmem:[#allocation5] sm:$0xf] %v100
    // Predicated region
    $region14: #{tpu_custom_call.1} parent=1 // pred_check
      %p102 = pneg %p23
    $region15: #{tpu_custom_call.1} parent=1 // pred_check_branch
      %104 = sbr.rel (%p102) target = $region17
    $region16: #{tpu_custom_call.1} parent=1 // pred_region
      %v105 = vld [vmem:[#allocation5] sm:$0xf]
      %v106 = vmul.f32 %v105, 0.25
      %107 = vst [vmem:[#allocation5] sm:$0xf] %v106
    $region17: #{tpu_custom_call.1} parent=1 // pred_fallthru
      _
    // Predicated region
    $region18: #{tpu_custom_call.1} parent=1 // pred_check
      _
    $region19: #{tpu_custom_call.1} parent=1 // pred_check_branch
      %109 = sbr.rel (0) target = $region21
    $region20: #{tpu_custom_call.1} parent=1 // pred_region
      %s111 = ssub.s32 64, 64
      %112 = vsyncadd [#allocation4], %s111
      %s114 = sshll.u32 [#allocation5], 4
      %s115 = int_to_ptr.vmem [resolvable:$true] %s114
      %117 = dma.vmem_to_hbm [thread:$0]  %s115, 64, %s1, [#allocation4]
    $region21: #{tpu_custom_call.1} parent=1 // pred_fallthru
      _
    // Predicated region
    $region22: #{tpu_custom_call.1} parent=1 // pred_check
      _
    $region23: #{tpu_custom_call.1} parent=1 // pred_check_branch
      %119 = sbr.rel (0) target = $region25
    $region24: #{tpu_custom_call.1} parent=1 // pred_region
      %120 = dma.done [#allocation4], 64
    $region25: #{tpu_custom_call.1} parent=1 // pred_fallthru
      _
    %121 = vsyncpa [#allocation3], 1
    %122 = vsyncpa [#allocation4], 1

</llo_original>
